<compile_context>
chip_gen: v7x
topology: tpu7x:2x2x1
jax: 0.10.0
libtpu: 0.0.40
codegen_flags: <defaults>
</compile_context>

<pallas_src>
import functools

import jax
import jax.numpy as jnp
from jax import lax
from jax.experimental import pallas as pl
from jax.experimental.pallas import tpu as pltpu

LANES = 128
_SUBLANE_MULT = {4: 8, 2: 16, 1: 32}  # itemsize -> minimum sublane tiling


def _round_up(x, m):
    return ((x + m - 1) // m) * m


def _hw_defaults():
    """(core_splits, bytes per input tile buffer, vmem_limit_bytes or None)."""
    try:
        kind = jax.devices()[0].device_kind.lower()
    except Exception:
        kind = ""
    if "v7" in kind:
        # 2 TensorCores/chip; 64 MiB physical VMEM, 32 MiB default scoped.
        # 2 inputs x 2 buffers x 4 MiB = 16 MiB, comfortably inside 32 MiB.
        return 2, 4 << 20, 32 << 20
    if "v5 lite" in kind or "v5e" in kind or "v5litepod" in kind:
        # 1 TC; 16 MiB default scoped VMEM -> 2 x 2 x 2 MiB = 8 MiB.
        return 1, 2 << 20, None
    # v6e (and default): 1 TC, 32 MiB default scoped VMEM.
    return 1, 4 << 20, 32 << 20


def _charbonnier_partial_sum_kernel(p_ref, t_ref, acc_ref, *,
                                    eps_sq, blocks_per_core, last_block,
                                    tail_valid, needs_tail_mask,
                                    needs_dup_guard):
    """Accumulate sum(sqrt(eps^2 + diff^2)) into a per-core (acc_rows,128) block."""
    c = pl.program_id(0)   # core-split index ("parallel")
    i = pl.program_id(1)   # row-block index within this split ("arbitrary")
    tile_rows, lanes = p_ref.shape
    acc_rows = acc_ref.shape[0]

    @pl.when(i == 0)
    def _():
        acc_ref[...] = jnp.zeros_like(acc_ref)

    # Native-width HBM reads, f32 math in-kernel.
    d = p_ref[...].astype(jnp.float32) - t_ref[...].astype(jnp.float32)
    val = jnp.sqrt(d * d + eps_sq)   # sqrt goes to the EUP slot (free filler)

    def accumulate(v):
        # Wide vreg-shaped accumulator: 2-4 independent add chains (ILP),
        # the tiny cross-lane reduction happens once in the wrapper.
        acc_ref[...] += jnp.sum(v.reshape(-1, acc_rows, lanes), axis=0)

    if not (needs_tail_mask or needs_dup_guard):
        # Block-aligned input, exact core split: pure streaming hot path.
        accumulate(val)
    else:
        block = c * blocks_per_core + i

        @pl.when(block < last_block)
        def _():
            accumulate(val)           # steady state: no iota/mask work

        @pl.when(block == last_block)
        def _():
            if needs_tail_mask:
                # Block-local element index (< tile_rows*128, no i32 overflow)
                # vs statically-computed remaining valid element count.
                row = lax.broadcasted_iota(jnp.int32, (tile_rows, lanes), 0)
                col = lax.broadcasted_iota(jnp.int32, (tile_rows, lanes), 1)
                elem = row * lanes + col
                accumulate(jnp.where(elem < tail_valid, val, 0.0))
            else:
                accumulate(val)
        # Clamped duplicate blocks (block > last_block) contribute nothing.


def charbonnier_loss(prediction, target, epsilon=0.001):
    assert prediction.shape == target.shape
    n = int(prediction.size)
    eps_sq = float(epsilon) ** 2

    # Flatten only (free on contiguous arrays); no wrapper astype, no big pad.
    p = jnp.ravel(prediction)
    t = jnp.ravel(target)
    itemsize = jnp.dtype(p.dtype).itemsize
    row_mult = _SUBLANE_MULT.get(itemsize, 8)

    # Lane padding only when n is not a multiple of 128 (lane-dense 2D view).
    lane_pad = (-n) % LANES
    if lane_pad:
        p = jnp.pad(p, (0, lane_pad))
        t = jnp.pad(t, (0, lane_pad))
    rows = (n + lane_pad) // LANES
    p2 = p.reshape(rows, LANES)
    t2 = t.reshape(rows, LANES)

    core_splits, tile_bytes, vmem_limit = _hw_defaults()

    # Tile rows from the byte budget, rounded to the dtype's sublane packing.
    budget_rows = max(row_mult,
                      (tile_bytes // (LANES * itemsize)) // row_mult * row_mult)
    tile_rows = min(budget_rows, _round_up(rows, row_mult))

    num_blocks = pl.cdiv(rows, tile_rows)
    num_splits = min(core_splits, num_blocks)
    blocks_per_core = pl.cdiv(num_blocks, num_splits)

    needs_tail_mask = (n != num_blocks * tile_rows * LANES)
    needs_dup_guard = (num_splits * blocks_per_core != num_blocks)
    # Valid elements inside the last block (static Python int, <= tile_rows*128).
    tail_valid = n - (num_blocks - 1) * tile_rows * LANES

    # Widen the per-split accumulator as far as tile_rows allows (ILP).
    acc_rows = 32 if tile_rows % 32 == 0 else (16 if tile_rows % 16 == 0 else 8)

    kernel = functools.partial(
        _charbonnier_partial_sum_kernel,
        eps_sq=eps_sq,
        blocks_per_core=blocks_per_core,
        last_block=num_blocks - 1,
        tail_valid=tail_valid,
        needs_tail_mask=needs_tail_mask,
        needs_dup_guard=needs_dup_guard,
    )

    def _in_map(c, i):
        # Clamp so no DMA starts past the array end; clamped duplicate blocks
        # are skipped inside the kernel.
        return (jnp.minimum(c * blocks_per_core + i, num_blocks - 1), 0)

    partials = pl.pallas_call(
        kernel,
        out_shape=jax.ShapeDtypeStruct((num_splits * acc_rows, LANES),
                                       jnp.float32),
        grid_spec=pltpu.PrefetchScalarGridSpec(
            num_scalar_prefetch=0,
            grid=(num_splits, blocks_per_core),
            in_specs=[
                pl.BlockSpec((tile_rows, LANES), _in_map),
                pl.BlockSpec((tile_rows, LANES), _in_map),
            ],
            # One resident (acc_rows,128) accumulator block per core split.
            out_specs=pl.BlockSpec((acc_rows, LANES), lambda c, i: (c, 0)),
        ),
        compiler_params=pltpu.CompilerParams(
            dimension_semantics=("parallel", "arbitrary"),
            vmem_limit_bytes=vmem_limit,
        ),
    )(p2, t2)

    # Final tiny reduction (at most 2*32*128 f32) + mean.
    return jnp.sum(partials) / jnp.float32(n)


if __name__ == "__main__":
    key = jax.random.PRNGKey(0)
    k1, k2 = jax.random.split(key)
    shape = (2, 4, 16, 16)  # NCHW, matching the PyTorch convention
    prediction = jax.random.normal(k1, shape, dtype=jnp.float32)
    target = jax.random.normal(k2, shape, dtype=jnp.float32)

    loss = charbonnier_loss(prediction, target, epsilon=0.001)
    jax.block_until_ready(loss)

    # Pure-JAX reference check (same math as the PyTorch forward).
    diff = prediction - target
    ref = jnp.mean(jnp.sqrt(diff * diff + 0.001 ** 2))
    assert jnp.allclose(loss, ref, rtol=1e-5, atol=1e-6), (loss, ref)

    print("KERNEL_OK")
</pallas_src>

<mosaic_0001>
module attributes {stable_mosaic.version = 11 : i64} {
  func.func @_charbonnier_partial_sum_kernel(%arg0: i32, %arg1: i32, %arg2: memref<16x128xf32, #tpu.memory_space<vmem>>, %arg3: memref<16x128xf32, #tpu.memory_space<vmem>>, %arg4: memref<16x128xf32, #tpu.memory_space<vmem>>) attributes {dimension_semantics = [#tpu.dimension_semantics<parallel>, #tpu.dimension_semantics<arbitrary>], iteration_bounds = array<i64: 1, 1>, scalar_prefetch = 0 : i64, scratch_operands = 0 : i64, tpu.core_type = #tpu.core_type<tc>, window_params = [{transform_indices = @transform_0, window_bounds = array<i64: 16, 128>}, {transform_indices = @transform_1, window_bounds = array<i64: 16, 128>}, {transform_indices = @transform_2, window_bounds = array<i64: 16, 128>}]} {
    %c0_i32 = arith.constant 0 : i32
    %0 = arith.cmpi eq, %arg1, %c0_i32 : i32
    %1 = arith.extui %0 : i1 to i32
    %c0_i32_0 = arith.constant 0 : i32
    %2 = arith.cmpi ne, %1, %c0_i32_0 : i32
    scf.if %2 {
      %cst_9 = arith.constant 0.000000e+00 : f32
      %15 = vector.broadcast %cst_9 : f32 to vector<16x128xf32>
      %c0_10 = arith.constant 0 : index
      %c0_11 = arith.constant 0 : index
      %16 = vector.load %arg4[%c0_10, %c0_11] : memref<16x128xf32, #tpu.memory_space<vmem>>, vector<16x128xf32>
      tpu.vector_store %arg4[%c0_10, %c0_11], %15 {strides = array<i32>} : memref<16x128xf32, #tpu.memory_space<vmem>>, vector<16x128xf32>,
    } else {
    }
    %c0 = arith.constant 0 : index
    %c0_1 = arith.constant 0 : index
    %3 = vector.load %arg2[%c0, %c0_1] : memref<16x128xf32, #tpu.memory_space<vmem>>, vector<16x128xf32>
    %c0_2 = arith.constant 0 : index
    %c0_3 = arith.constant 0 : index
    %4 = vector.load %arg3[%c0_2, %c0_3] : memref<16x128xf32, #tpu.memory_space<vmem>>, vector<16x128xf32>
    %5 = arith.subf %3, %4 : vector<16x128xf32>
    %6 = arith.mulf %5, %5 : vector<16x128xf32>
    %cst = arith.constant 9.99999997E-7 : f32
    %7 = vector.broadcast %cst : f32 to vector<16x128xf32>
    %8 = arith.addf %6, %7 : vector<16x128xf32>
    %9 = math.sqrt %8 : vector<16x128xf32>
    %c0_4 = arith.constant 0 : index
    %c0_5 = arith.constant 0 : index
    %10 = vector.load %arg4[%c0_4, %c0_5] : memref<16x128xf32, #tpu.memory_space<vmem>>, vector<16x128xf32>
    %11 = vector.shape_cast %9 : vector<16x128xf32> to vector<1x16x128xf32>
    %cst_6 = arith.constant dense<0.000000e+00> : vector<16x128xf32>
    %12 = vector.multi_reduction <add>, %11, %cst_6 [0] : vector<1x16x128xf32> to vector<16x128xf32>
    %13 = arith.addf %10, %12 : vector<16x128xf32>
    %c0_7 = arith.constant 0 : index
    %c0_8 = arith.constant 0 : index
    %14 = vector.load %arg4[%c0_7, %c0_8] : memref<16x128xf32, #tpu.memory_space<vmem>>, vector<16x128xf32>
    tpu.vector_store %arg4[%c0_7, %c0_8], %13 {strides = array<i32>} : memref<16x128xf32, #tpu.memory_space<vmem>>, vector<16x128xf32>,
    return
  }
  func.func @transform_0(%arg0: i32, %arg1: i32) -> (i32, i32) {
    %c1_i32 = arith.constant 1 : i32
    %0 = arith.muli %arg0, %c1_i32 : i32
    %1 = arith.addi %0, %arg1 : i32
    %c0_i32 = arith.constant 0 : i32
    %2 = arith.minsi %1, %c0_i32 : i32
    %c0_i32_0 = arith.constant 0 : i32
    %c0_i32_1 = arith.constant 0 : i32
    return %2, %c0_i32_0 : i32, i32
  }
  func.func @transform_1(%arg0: i32, %arg1: i32) -> (i32, i32) {
    %c1_i32 = arith.constant 1 : i32
    %0 = arith.muli %arg0, %c1_i32 : i32
    %1 = arith.addi %0, %arg1 : i32
    %c0_i32 = arith.constant 0 : i32
    %2 = arith.minsi %1, %c0_i32 : i32
    %c0_i32_0 = arith.constant 0 : i32
    %c0_i32_1 = arith.constant 0 : i32
    return %2, %c0_i32_0 : i32, i32
  }
  func.func @transform_2(%arg0: i32, %arg1: i32) -> (i32, i32) {
    %c0_i32 = arith.constant 0 : i32
    %c0_i32_0 = arith.constant 0 : i32
    return %arg0, %c0_i32 : i32, i32
  }
}

</mosaic_0001>

<llo_original>
// kernel: tpu_custom_call.1
$region0: #{tpu_custom_call.1}
  #allocation0 [shape = 'u32[]', space=smem, size = 0x4, offset = 0x4, fixed_abs, tag = 'smem constant byte address 0x4 - core index']
  #allocation1 [shape = 'u32[144,128]{1,0:T(1,128)}', space=vmem, size = 0x12000, scoped, tag = 'internal scratch']
  %s0 = inlined_call_operand.hbm [shape: f32[16,128], index: 0, kind: input, shape index: {}]
  %s1 = inlined_call_operand.hbm [shape: f32[16,128], index: 1, kind: input, shape index: {}]
  %s2 = inlined_call_operand.hbm [shape: f32[16,128], index: 2, kind: output, shape index: {}]
  %s3 = sld [smem:[#allocation0]]
  $region30: #{tpu_custom_call.1} parent=0
    _
  %s5 = ssub.s32 1, %s3
  %s6 = scalar_select 0, %s5, %s3
  $region1: #{tpu_custom_call.1} parent=0
    #allocation2 [shape = 'u8[8192]{0}', space=vmem, size = 0x2000, scoped, tag = 'input window, operand 0, single buffered']
    #allocation3 [shape = 's32[1]{0}', space=sflag, size = 0x4, scoped, tag = 'scoped memory for tpu_custom_call.1']
    #allocation4 [shape = 's32[1]{0}', space=sflag, size = 0x4, scoped, tag = 'scoped memory for tpu_custom_call.1']
    #allocation5 [shape = 'u8[8192]{0}', space=vmem, size = 0x2000, scoped, tag = 'input window, operand 1, single buffered']
    #allocation6 [shape = 's32[1]{0}', space=sflag, size = 0x4, scoped, tag = 'scoped memory for tpu_custom_call.1']
    #allocation7 [shape = 'u8[8192]{0}', space=vmem, size = 0x2000, scoped, tag = 'output window, operand 0, single buffered']
    %7 = vsyncpa [#allocation3], 0
    %8 = vsyncpa [#allocation6], 0
    %9 = vsyncpa [#allocation4], 0
    // Predicated region
    $region2: #{tpu_custom_call.1} parent=1 // pred_check
      _
    $region3: #{tpu_custom_call.1} parent=1 // pred_check_branch
      %11 = sbr.rel (0) target = $region5
    $region4: #{tpu_custom_call.1} parent=1 // pred_region
      %s12 = sadd.s32 0, 0
      %p13 = scmp.lt.s32.totalorder %s12, 0
      %s14 = scalar_select %p13, %s12, 0
      %s15 = smul.u32 2, %s14
      %s17 = ssub.s32 256, 256
      %18 = vsyncadd [#allocation3], %s17
      %s19 = smul.addr %s15, 128
      %s20 = scalar_lea.hbm %s0, %s19
      %s21 = sshll.u32 [#allocation2], 4
      %s22 = int_to_ptr.vmem [resolvable:$true] %s21
      %27 = dma.hbm_to_vmem [thread:$0]  %s20, 256, %s22, [#allocation3], 128, 128, 8
    $region5: #{tpu_custom_call.1} parent=1 // pred_fallthru
      _
    // Predicated region
    $region6: #{tpu_custom_call.1} parent=1 // pred_check
      _
    $region7: #{tpu_custom_call.1} parent=1 // pred_check_branch
      %29 = sbr.rel (0) target = $region9
    $region8: #{tpu_custom_call.1} parent=1 // pred_region
      %s30 = sadd.s32 0, 0
      %p31 = scmp.lt.s32.totalorder %s30, 0
      %s32 = scalar_select %p31, %s30, 0
      %s33 = smul.u32 2, %s32
      %s35 = ssub.s32 256, 256
      %36 = vsyncadd [#allocation6], %s35
      %s37 = smul.addr %s33, 128
      %s38 = scalar_lea.hbm %s1, %s37
      %s39 = sshll.u32 [#allocation5], 4
      %s40 = int_to_ptr.vmem [resolvable:$true] %s39
      %45 = dma.hbm_to_vmem [thread:$0]  %s38, 256, %s40, [#allocation6], 128, 128, 8
    $region9: #{tpu_custom_call.1} parent=1 // pred_fallthru
      _
    // Predicated region
    $region10: #{tpu_custom_call.1} parent=1 // pred_check
      _
    $region11: #{tpu_custom_call.1} parent=1 // pred_check_branch
      %47 = sbr.rel (0) target = $region13
    $region12: #{tpu_custom_call.1} parent=1 // pred_region
      %48 = dma.done [#allocation3], 256
    $region13: #{tpu_custom_call.1} parent=1 // pred_fallthru
      _
    // Predicated region
    $region14: #{tpu_custom_call.1} parent=1 // pred_check
      _
    $region15: #{tpu_custom_call.1} parent=1 // pred_check_branch
      %50 = sbr.rel (0) target = $region17
    $region16: #{tpu_custom_call.1} parent=1 // pred_region
      %51 = dma.done [#allocation6], 256
    $region17: #{tpu_custom_call.1} parent=1 // pred_fallthru
      _
    %s52 = sadd.s32 0, 0
    %p53 = scmp.lt.s32.totalorder %s52, 0
    %s54 = scalar_select %p53, %s52, 0
    %s55 = smul.u32 2, %s54
    %s56 = sadd.s32 0, 0
    %p57 = scmp.lt.s32.totalorder %s56, 0
    %s58 = scalar_select %p57, %s56, 0
    %s59 = smul.u32 2, %s58
    %p60 = scmp.eq.s32.totalorder 0, 0
    // Predicated region
    $region18: #{tpu_custom_call.1} parent=1 // pred_check
      %p61 = pneg %p60
    $region19: #{tpu_custom_call.1} parent=1 // pred_check_branch
      %63 = sbr.rel (%p61) target = $region21
    $region20: #{tpu_custom_call.1} parent=1 // pred_region
      %64 = vst [vmem:[#allocation7] sm:$0xff] 0.0
      %65 = vst [vmem:[#allocation7 + $0x8] sm:$0xff] 0.0
    $region21: #{tpu_custom_call.1} parent=1 // pred_fallthru
      _
    %v66 = vld [vmem:[#allocation2] sm:$0xff]
    %v67 = vld [vmem:[#allocation2 + $0x8] sm:$0xff]
    %v68 = vld [vmem:[#allocation5] sm:$0xff]
    %v69 = vld [vmem:[#allocation5 + $0x8] sm:$0xff]
    %v70 = vsub.f32 %v66, %v68
    %v71 = vsub.f32 %v67, %v69
    %v72 = vmul.f32 %v70, %v70
    %v73 = vmul.f32 %v71, %v71
    %v74 = vadd.f32 %v72, 1e-06
    %v75 = vadd.f32 %v73, 1e-06
    %v76 = vrsqrt.pop %v74
    %v77 = vmul.f32 %v74, %v76
    %vm78 = vcmp.eq.f32.partialorder %v74, inf
    %v79 = vsel %vm78, %v74, %v77
    %vm80 = vcmp.eq.f32.partialorder %v74, 0.0
    %v81 = vand.u32 %v74, 2147483648
    %v82 = vsel %vm80, %v81, %v79
    %v83 = vrsqrt.pop %v75
    %v84 = vmul.f32 %v75, %v83
    %vm85 = vcmp.eq.f32.partialorder %v75, inf
    %v86 = vsel %vm85, %v75, %v84
    %vm87 = vcmp.eq.f32.partialorder %v75, 0.0
    %v88 = vand.u32 %v75, 2147483648
    %v89 = vsel %vm87, %v88, %v86
    %v90 = vld [vmem:[#allocation7] sm:$0xff]
    %v91 = vld [vmem:[#allocation7 + $0x8] sm:$0xff]
    %v92 = vadd.f32 %v82, 0.0
    %v93 = vadd.f32 %v89, 0.0
    %v94 = vadd.f32 %v90, %v92
    %v95 = vadd.f32 %v91, %v93
    %96 = vst [vmem:[#allocation7] sm:$0xff] %v94
    %97 = vst [vmem:[#allocation7 + $0x8] sm:$0xff] %v95
    // Predicated region
    $region22: #{tpu_custom_call.1} parent=1 // pred_check
      _
    $region23: #{tpu_custom_call.1} parent=1 // pred_check_branch
      %99 = sbr.rel (0) target = $region25
    $region24: #{tpu_custom_call.1} parent=1 // pred_region
      %s101 = ssub.s32 256, 256
      %102 = vsyncadd [#allocation4], %s101
      %s103 = sshll.u32 [#allocation7], 4
      %s104 = int_to_ptr.vmem [resolvable:$true] %s103
      %109 = dma.vmem_to_hbm [thread:$0]  %s104, 256, %s2, [#allocation4], 128, 128, 8
    $region25: #{tpu_custom_call.1} parent=1 // pred_fallthru
      _
    // Predicated region
    $region26: #{tpu_custom_call.1} parent=1 // pred_check
      _
    $region27: #{tpu_custom_call.1} parent=1 // pred_check_branch
      %111 = sbr.rel (0) target = $region29
    $region28: #{tpu_custom_call.1} parent=1 // pred_region
      %112 = dma.done [#allocation4], 256
    $region29: #{tpu_custom_call.1} parent=1 // pred_fallthru
      _
    %113 = vsyncpa [#allocation3], 1
    %114 = vsyncpa [#allocation6], 1
    %115 = vsyncpa [#allocation4], 1

</llo_original>
